<compile_context>
chip_gen: v7x
topology: tpu7x:2x2x1
jax: 0.10.0
libtpu: 0.0.40
codegen_flags: <defaults>
</compile_context>

<pallas_src>
import math

import jax
import jax.numpy as jnp
from jax.experimental import pallas as pl
from jax.experimental.pallas import tpu as pltpu


def mlp_kernel(x_ref, w1_ref, b1_ref, w2_ref, b2_ref, w3_ref, b3_ref, o_ref):
    # x_ref: (3, TB) -- batch on the lane axis (lane-dense, unmasked stores).
    # Weight/bias refs see the same (tiny) block every grid step -> resident.
    x = x_ref[...]
    z = jnp.tanh(
        jnp.dot(w1_ref[...], x, preferred_element_type=jnp.float32) + b1_ref[...]
    )
    z = jnp.tanh(
        jnp.dot(w2_ref[...], z, preferred_element_type=jnp.float32) + b2_ref[...]
    )
    z = jnp.abs(
        jnp.dot(w3_ref[...], z, preferred_element_type=jnp.float32) + b3_ref[...]
    )
    o_ref[...] = z.astype(o_ref.dtype)


def net_forward(x, params, *, tb=8192):
    """x: (B, 3) row-major, same as the torch module sees. Returns (B, 3)."""
    w1, b1, w2, b2, w3, b3 = params  # w: (out, in), b: (out, 1)
    B, F = x.shape
    # Batch tile on the lane axis: multiple of 128; don't over-allocate small B.
    tb = max(128, min(tb, pl.cdiv(B, 128) * 128))
    Bp = pl.cdiv(B, tb) * tb
    # Layout plumbing in the wrapper (not in-kernel): transpose to
    # (features, batch) and pad the batch axis to a whole number of tiles.
    xt = jnp.zeros((F, Bp), x.dtype).at[:, :B].set(x.T)

    def resident(shape):
        # Same block every grid step -> stays in VMEM across the batch loop.
        return pl.BlockSpec(shape, lambda i: (0, 0))

    out_t = pl.pallas_call(
        mlp_kernel,
        out_shape=jax.ShapeDtypeStruct((w3.shape[0], Bp), x.dtype),
        grid=(Bp // tb,),
        in_specs=[
            pl.BlockSpec((F, tb), lambda i: (0, i)),  # x: tiled over batch
            resident(w1.shape), resident(b1.shape),
            resident(w2.shape), resident(b2.shape),
            resident(w3.shape), resident(b3.shape),
        ],
        out_specs=pl.BlockSpec((w3.shape[0], tb), lambda i: (0, i)),
        compiler_params=pltpu.CompilerParams(
            # Batch tiles are independent -> shard across v7x's 2 TensorCores.
            dimension_semantics=("parallel",),
        ),
    )(xt, w1, b1, w2, b2, w3, b3)
    # Drop batch padding and return in the original (B, 3) layout.
    return out_t[:, :B].T


def _xavier_uniform(key, fan_out, fan_in, dtype=jnp.float32):
    # torch.nn.init.xavier_uniform_ (gain=1.0) on a (out, in) weight.
    bound = math.sqrt(6.0 / (fan_in + fan_out))
    return jax.random.uniform(key, (fan_out, fan_in), dtype, minval=-bound, maxval=bound)


def _torch_linear_default_weight(key, fan_out, fan_in, dtype=jnp.float32):
    # torch.nn.Linear default: kaiming_uniform_(a=sqrt(5)) == U(-1/sqrt(fan_in), 1/sqrt(fan_in)).
    bound = 1.0 / math.sqrt(fan_in)
    return jax.random.uniform(key, (fan_out, fan_in), dtype, minval=-bound, maxval=bound)


def _torch_linear_default_bias(key, fan_in, fan_out, dtype=jnp.float32):
    # torch.nn.Linear default bias init: U(-1/sqrt(fan_in), 1/sqrt(fan_in)), stored (out, 1).
    bound = 1.0 / math.sqrt(fan_in)
    return jax.random.uniform(key, (fan_out, 1), dtype, minval=-bound, maxval=bound)


def init_params(key):
    k1, k2, k3, k4, k5, k6 = jax.random.split(key, 6)
    # hid1: Linear(3, 10) with xavier_uniform weight, default bias
    w1 = _xavier_uniform(k1, 10, 3)
    b1 = _torch_linear_default_bias(k2, 3, 10)
    # hid2: Linear(10, 10) with xavier_uniform weight, default bias
    w2 = _xavier_uniform(k3, 10, 10)
    b2 = _torch_linear_default_bias(k4, 10, 10)
    # oupt: Linear(10, 3) with torch default (kaiming-uniform a=sqrt(5)) weight + bias
    w3 = _torch_linear_default_weight(k5, 3, 10)
    b3 = _torch_linear_default_bias(k6, 10, 3)
    return (w1, b1, w2, b2, w3, b3)


if __name__ == "__main__":
    key = jax.random.PRNGKey(0)
    kp, kx = jax.random.split(key)
    params = init_params(kp)

    # Small deterministic example; 300 rows exercises batch padding (300 -> 384)
    # and a multi-step grid (3 tiles of 128).
    batch = 300
    x = jax.random.normal(kx, (batch, 3), dtype=jnp.float32)

    out = net_forward(x, params, tb=128)
    jax.block_until_ready(out)

    # Pure-JAX reference of the same semantics (torch: y = x @ W.T + b).
    w1, b1, w2, b2, w3, b3 = params
    z = jnp.tanh(x @ w1.T + b1[:, 0])
    z = jnp.tanh(z @ w2.T + b2[:, 0])
    ref = jnp.abs(z @ w3.T + b3[:, 0])

    assert out.shape == (batch, 3)
    assert jnp.allclose(out, ref, atol=1e-5, rtol=1e-5)

    print("KERNEL_OK")
</pallas_src>

<mosaic_0001>
module attributes {stable_mosaic.version = 11 : i64} {
  func.func @mlp_kernel(%arg0: i32, %arg1: memref<3x128xf32, #tpu.memory_space<vmem>>, %arg2: memref<10x3xf32, #tpu.memory_space<vmem>>, %arg3: memref<10x1xf32, #tpu.memory_space<vmem>>, %arg4: memref<10x10xf32, #tpu.memory_space<vmem>>, %arg5: memref<10x1xf32, #tpu.memory_space<vmem>>, %arg6: memref<3x10xf32, #tpu.memory_space<vmem>>, %arg7: memref<3x1xf32, #tpu.memory_space<vmem>>, %arg8: memref<3x128xf32, #tpu.memory_space<vmem>>) attributes {dimension_semantics = [#tpu.dimension_semantics<parallel>], iteration_bounds = array<i64: 3>, scalar_prefetch = 0 : i64, scratch_operands = 0 : i64, tpu.core_type = #tpu.core_type<tc>, window_params = [{transform_indices = @transform_0, window_bounds = array<i64: 3, 128>}, {pipeline_mode = #tpu.pipeline_mode<synchronous>, transform_indices = @transform_1, window_bounds = array<i64: 10, 3>}, {pipeline_mode = #tpu.pipeline_mode<synchronous>, transform_indices = @transform_2, window_bounds = array<i64: 10, 1>}, {pipeline_mode = #tpu.pipeline_mode<synchronous>, transform_indices = @transform_3, window_bounds = array<i64: 10, 10>}, {pipeline_mode = #tpu.pipeline_mode<synchronous>, transform_indices = @transform_4, window_bounds = array<i64: 10, 1>}, {pipeline_mode = #tpu.pipeline_mode<synchronous>, transform_indices = @transform_5, window_bounds = array<i64: 3, 10>}, {pipeline_mode = #tpu.pipeline_mode<synchronous>, transform_indices = @transform_6, window_bounds = array<i64: 3, 1>}, {transform_indices = @transform_7, window_bounds = array<i64: 3, 128>}]} {
    %c0 = arith.constant 0 : index
    %c0_0 = arith.constant 0 : index
    %0 = vector.load %arg1[%c0, %c0_0] : memref<3x128xf32, #tpu.memory_space<vmem>>, vector<3x128xf32>
    %c0_1 = arith.constant 0 : index
    %c0_2 = arith.constant 0 : index
    %1 = vector.load %arg2[%c0_1, %c0_2] : memref<10x3xf32, #tpu.memory_space<vmem>>, vector<10x3xf32>
    %cst = arith.constant dense<0.000000e+00> : vector<10x128xf32>
    %2 = tpu.matmul %1, %0, %cst {dimension_numbers = #tpu.dot_dimension_numbers<[1], [0], [0], [1], [0, 0, 1, 1], [], []>} : vector<10x3xf32>, vector<3x128xf32>, vector<10x128xf32> -> vector<10x128xf32>
    %c0_3 = arith.constant 0 : index
    %c0_4 = arith.constant 0 : index
    %3 = vector.load %arg3[%c0_3, %c0_4] : memref<10x1xf32, #tpu.memory_space<vmem>>, vector<10x1xf32>
    %4 = vector.broadcast %3 : vector<10x1xf32> to vector<10x128xf32>
    %5 = arith.addf %2, %4 : vector<10x128xf32>
    %6 = math.tanh %5 : vector<10x128xf32>
    %c0_5 = arith.constant 0 : index
    %c0_6 = arith.constant 0 : index
    %7 = vector.load %arg4[%c0_5, %c0_6] : memref<10x10xf32, #tpu.memory_space<vmem>>, vector<10x10xf32>
    %cst_7 = arith.constant dense<0.000000e+00> : vector<10x128xf32>
    %8 = tpu.matmul %7, %6, %cst_7 {dimension_numbers = #tpu.dot_dimension_numbers<[1], [0], [0], [1], [0, 0, 1, 1], [], []>} : vector<10x10xf32>, vector<10x128xf32>, vector<10x128xf32> -> vector<10x128xf32>
    %c0_8 = arith.constant 0 : index
    %c0_9 = arith.constant 0 : index
    %9 = vector.load %arg5[%c0_8, %c0_9] : memref<10x1xf32, #tpu.memory_space<vmem>>, vector<10x1xf32>
    %10 = vector.broadcast %9 : vector<10x1xf32> to vector<10x128xf32>
    %11 = arith.addf %8, %10 : vector<10x128xf32>
    %12 = math.tanh %11 : vector<10x128xf32>
    %c0_10 = arith.constant 0 : index
    %c0_11 = arith.constant 0 : index
    %13 = vector.load %arg6[%c0_10, %c0_11] : memref<3x10xf32, #tpu.memory_space<vmem>>, vector<3x10xf32>
    %cst_12 = arith.constant dense<0.000000e+00> : vector<3x128xf32>
    %14 = tpu.matmul %13, %12, %cst_12 {dimension_numbers = #tpu.dot_dimension_numbers<[1], [0], [0], [1], [0, 0, 1, 1], [], []>} : vector<3x10xf32>, vector<10x128xf32>, vector<3x128xf32> -> vector<3x128xf32>
    %c0_13 = arith.constant 0 : index
    %c0_14 = arith.constant 0 : index
    %15 = vector.load %arg7[%c0_13, %c0_14] : memref<3x1xf32, #tpu.memory_space<vmem>>, vector<3x1xf32>
    %16 = vector.broadcast %15 : vector<3x1xf32> to vector<3x128xf32>
    %17 = arith.addf %14, %16 : vector<3x128xf32>
    %18 = math.absf %17 : vector<3x128xf32>
    %c0_15 = arith.constant 0 : index
    %c0_16 = arith.constant 0 : index
    %19 = vector.load %arg8[%c0_15, %c0_16] : memref<3x128xf32, #tpu.memory_space<vmem>>, vector<3x128xf32>
    tpu.vector_store %arg8[%c0_15, %c0_16], %18 {strides = array<i32>} : memref<3x128xf32, #tpu.memory_space<vmem>>, vector<3x128xf32>,
    return
  }
  func.func @transform_0(%arg0: i32) -> (i32, i32) {
    %c0_i32 = arith.constant 0 : i32
    %c0_i32_0 = arith.constant 0 : i32
    return %c0_i32, %arg0 : i32, i32
  }
  func.func @transform_1(%arg0: i32) -> (i32, i32) {
    %c0_i32 = arith.constant 0 : i32
    %c0_i32_0 = arith.constant 0 : i32
    %c0_i32_1 = arith.constant 0 : i32
    return %c0_i32, %c0_i32_0 : i32, i32
  }
  func.func @transform_2(%arg0: i32) -> (i32, i32) {
    %c0_i32 = arith.constant 0 : i32
    %c0_i32_0 = arith.constant 0 : i32
    %c0_i32_1 = arith.constant 0 : i32
    return %c0_i32, %c0_i32_0 : i32, i32
  }
  func.func @transform_3(%arg0: i32) -> (i32, i32) {
    %c0_i32 = arith.constant 0 : i32
    %c0_i32_0 = arith.constant 0 : i32
    %c0_i32_1 = arith.constant 0 : i32
    return %c0_i32, %c0_i32_0 : i32, i32
  }
  func.func @transform_4(%arg0: i32) -> (i32, i32) {
    %c0_i32 = arith.constant 0 : i32
    %c0_i32_0 = arith.constant 0 : i32
    %c0_i32_1 = arith.constant 0 : i32
    return %c0_i32, %c0_i32_0 : i32, i32
  }
  func.func @transform_5(%arg0: i32) -> (i32, i32) {
    %c0_i32 = arith.constant 0 : i32
    %c0_i32_0 = arith.constant 0 : i32
    %c0_i32_1 = arith.constant 0 : i32
    return %c0_i32, %c0_i32_0 : i32, i32
  }
  func.func @transform_6(%arg0: i32) -> (i32, i32) {
    %c0_i32 = arith.constant 0 : i32
    %c0_i32_0 = arith.constant 0 : i32
    %c0_i32_1 = arith.constant 0 : i32
    return %c0_i32, %c0_i32_0 : i32, i32
  }
  func.func @transform_7(%arg0: i32) -> (i32, i32) {
    %c0_i32 = arith.constant 0 : i32
    %c0_i32_0 = arith.constant 0 : i32
    return %c0_i32, %arg0 : i32, i32
  }
}

</mosaic_0001>

<llo_original>
// kernel: tpu_custom_call.1
$region0: #{tpu_custom_call.1}
  #allocation0 [shape = 'u32[]', space=smem, size = 0x4, offset = 0x4, fixed_abs, tag = 'smem constant byte address 0x4 - core index']
  #allocation1 [shape = 'u32[144,128]{1,0:T(1,128)}', space=vmem, size = 0x12000, scoped, tag = 'internal scratch']
  %s0 = inlined_call_operand.vmem [shape: f32[3,384], index: 0, kind: input, shape index: {}]
  %s1 = inlined_call_operand.vmem [shape: f32[10,3], index: 1, kind: input, shape index: {}]
  %s2 = inlined_call_operand.vmem [shape: f32[10,1], index: 2, kind: input, shape index: {}]
  %s3 = inlined_call_operand.vmem [shape: f32[10,10], index: 3, kind: input, shape index: {}]
  %s4 = inlined_call_operand.vmem [shape: f32[10,1], index: 4, kind: input, shape index: {}]
  %s5 = inlined_call_operand.vmem [shape: f32[3,10], index: 5, kind: input, shape index: {}]
  %s6 = inlined_call_operand.vmem [shape: f32[3,1], index: 6, kind: input, shape index: {}]
  %s7 = inlined_call_operand.hbm [shape: f32[3,384], index: 7, kind: output, shape index: {}]
  %s8 = sld [smem:[#allocation0]]
  $region61: #{tpu_custom_call.1} parent=0
    _
  %s10 = ssub.s32 1, %s8
  %s11 = scalar_select 0, %s10, %s8
  $region1: #{tpu_custom_call.1} parent=0
    #allocation2 [shape = 'u8[4096]{0}', space=vmem, size = 0x1000, scoped, tag = 'output window, operand 0']
    #allocation3 [shape = 's32[2]{0}', space=sflag, size = 0x8, scoped, tag = 'scoped memory for tpu_custom_call.1']
    %12 = vsyncpa [#allocation3], 0
    %s13 = scalar_lea.sflag [#allocation3], 1
    %14 = vsyncpa %s13, 0
    loop: start=0, step=1, limit=5
    $region2: #{tpu_custom_call.1} parent=1 // loop_pre_header
      _
    $region3: #{tpu_custom_call.1} parent=1 // loop_header
      %s16 = sphi 0, %s20
      %p17 = scmp.ge.s32.totalorder %s16, 5
      %s26 = sphi 0, %s28
      %s29 = sphi 0, %s26
      %s30 = sphi 0, %s29
      %s46 = sphi 0, %s30
      %s50 = sphi 0, %s50
      %s52 = sphi 0, %s50
      %s53 = sphi 0, %s52
      %s67 = sphi 0, %s53
      %s71 = sphi 0, %s71
      %s73 = sphi 0, %s71
      %s74 = sphi 0, %s73
      %s88 = sphi 0, %s74
      %s92 = sphi 0, %s92
      %s94 = sphi 0, %s92
      %s95 = sphi 0, %s94
      %s109 = sphi 0, %s95
      %s113 = sphi 0, %s113
      %s115 = sphi 0, %s113
      %s116 = sphi 0, %s115
      %s130 = sphi 0, %s116
      %s134 = sphi 0, %s134
      %s136 = sphi 0, %s134
      %s137 = sphi 0, %s136
      %s151 = sphi 0, %s137
      %s155 = sphi 0, %s155
      %s157 = sphi 0, %s155
      %s158 = sphi 0, %s157
      %s172 = sphi 0, %s158
      %s178 = sphi 0, %s180
      %s181 = sphi 0, %s178
      %s182 = sphi 0, %s181
      %s198 = sphi 0, %s182
    $region4: #{tpu_custom_call.1} parent=1 // loop_header_branch
      %19 = sbr.rel (%p17) target = $region8
    $region5: #{tpu_custom_call.1} parent=1 // loop_body
      %s21 = ssub.s32 %s16, 1
      %s22 = ssub.s32 %s16, 2
      %s23 = sadd.s32 %s16, 1
      %s24 = ssub.s32 %s16, %s23
      %p25 = scmp.eq.s32.totalorder %s24, 0
      %s27 = sadd.s32 %s26, 1
      %s28 = scalar_select %p25, %s26, %s27
      %p31 = pneg %p25
      %p32 = scmp.eq.s32.totalorder %s16, 2
      %p33 = por %p31, %p32
      %p34 = scmp.ne.s32.totalorder %s26, %s29
      %p35 = scmp.eq.s32.totalorder %s16, 0
      %p36 = por %p34, %p35
      %p37 = scmp.ne.s32.totalorder %s26, %s29
      %p38 = scmp.eq.s32.totalorder %s21, 2
      %p39 = por %p37, %p38
      %p40 = scmp.ne.s32.totalorder %s29, %s30
      %p41 = scmp.eq.s32.totalorder %s21, 0
      %p42 = por %p40, %p41
      %p43 = scmp.ne.s32.totalorder %s29, %s30
      %p44 = scmp.eq.s32.totalorder %s22, 2
      %p45 = por %p43, %p44
      %p47 = scmp.ne.s32.totalorder %s30, %s46
      %p48 = scmp.eq.s32.totalorder %s22, 0
      %p49 = por %p47, %p48
      %s51 = sadd.s32 %s50, 1
      %p54 = scmp.eq.s32.totalorder %s16, 2
      %p55 = scmp.ne.s32.totalorder %s50, %s52
      %p56 = scmp.eq.s32.totalorder %s16, 0
      %p57 = por %p55, %p56
      %p58 = scmp.ne.s32.totalorder %s50, %s52
      %p59 = scmp.eq.s32.totalorder %s21, 2
      %p60 = por %p58, %p59
      %p61 = scmp.ne.s32.totalorder %s52, %s53
      %p62 = scmp.eq.s32.totalorder %s21, 0
      %p63 = por %p61, %p62
      %p64 = scmp.ne.s32.totalorder %s52, %s53
      %p65 = scmp.eq.s32.totalorder %s22, 2
      %p66 = por %p64, %p65
      %p68 = scmp.ne.s32.totalorder %s53, %s67
      %p69 = scmp.eq.s32.totalorder %s22, 0
      %p70 = por %p68, %p69
      %s72 = sadd.s32 %s71, 1
      %p75 = scmp.eq.s32.totalorder %s16, 2
      %p76 = scmp.ne.s32.totalorder %s71, %s73
      %p77 = scmp.eq.s32.totalorder %s16, 0
      %p78 = por %p76, %p77
      %p79 = scmp.ne.s32.totalorder %s71, %s73
      %p80 = scmp.eq.s32.totalorder %s21, 2
      %p81 = por %p79, %p80
      %p82 = scmp.ne.s32.totalorder %s73, %s74
      %p83 = scmp.eq.s32.totalorder %s21, 0
      %p84 = por %p82, %p83
      %p85 = scmp.ne.s32.totalorder %s73, %s74
      %p86 = scmp.eq.s32.totalorder %s22, 2
      %p87 = por %p85, %p86
      %p89 = scmp.ne.s32.totalorder %s74, %s88
      %p90 = scmp.eq.s32.totalorder %s22, 0
      %p91 = por %p89, %p90
      %s93 = sadd.s32 %s92, 1
      %p96 = scmp.eq.s32.totalorder %s16, 2
      %p97 = scmp.ne.s32.totalorder %s92, %s94
      %p98 = scmp.eq.s32.totalorder %s16, 0
      %p99 = por %p97, %p98
      %p100 = scmp.ne.s32.totalorder %s92, %s94
      %p101 = scmp.eq.s32.totalorder %s21, 2
      %p102 = por %p100, %p101
      %p103 = scmp.ne.s32.totalorder %s94, %s95
      %p104 = scmp.eq.s32.totalorder %s21, 0
      %p105 = por %p103, %p104
      %p106 = scmp.ne.s32.totalorder %s94, %s95
      %p107 = scmp.eq.s32.totalorder %s22, 2
      %p108 = por %p106, %p107
      %p110 = scmp.ne.s32.totalorder %s95, %s109
      %p111 = scmp.eq.s32.totalorder %s22, 0
      %p112 = por %p110, %p111
      %s114 = sadd.s32 %s113, 1
      %p117 = scmp.eq.s32.totalorder %s16, 2
      %p118 = scmp.ne.s32.totalorder %s113, %s115
      %p119 = scmp.eq.s32.totalorder %s16, 0
      %p120 = por %p118, %p119
      %p121 = scmp.ne.s32.totalorder %s113, %s115
      %p122 = scmp.eq.s32.totalorder %s21, 2
      %p123 = por %p121, %p122
      %p124 = scmp.ne.s32.totalorder %s115, %s116
      %p125 = scmp.eq.s32.totalorder %s21, 0
      %p126 = por %p124, %p125
      %p127 = scmp.ne.s32.totalorder %s115, %s116
      %p128 = scmp.eq.s32.totalorder %s22, 2
      %p129 = por %p127, %p128
      %p131 = scmp.ne.s32.totalorder %s116, %s130
      %p132 = scmp.eq.s32.totalorder %s22, 0
      %p133 = por %p131, %p132
      %s135 = sadd.s32 %s134, 1
      %p138 = scmp.eq.s32.totalorder %s16, 2
      %p139 = scmp.ne.s32.totalorder %s134, %s136
      %p140 = scmp.eq.s32.totalorder %s16, 0
      %p141 = por %p139, %p140
      %p142 = scmp.ne.s32.totalorder %s134, %s136
      %p143 = scmp.eq.s32.totalorder %s21, 2
      %p144 = por %p142, %p143
      %p145 = scmp.ne.s32.totalorder %s136, %s137
      %p146 = scmp.eq.s32.totalorder %s21, 0
      %p147 = por %p145, %p146
      %p148 = scmp.ne.s32.totalorder %s136, %s137
      %p149 = scmp.eq.s32.totalorder %s22, 2
      %p150 = por %p148, %p149
      %p152 = scmp.ne.s32.totalorder %s137, %s151
      %p153 = scmp.eq.s32.totalorder %s22, 0
      %p154 = por %p152, %p153
      %s156 = sadd.s32 %s155, 1
      %p159 = scmp.eq.s32.totalorder %s16, 2
      %p160 = scmp.ne.s32.totalorder %s155, %s157
      %p161 = scmp.eq.s32.totalorder %s16, 0
      %p162 = por %p160, %p161
      %p163 = scmp.ne.s32.totalorder %s155, %s157
      %p164 = scmp.eq.s32.totalorder %s21, 2
      %p165 = por %p163, %p164
      %p166 = scmp.ne.s32.totalorder %s157, %s158
      %p167 = scmp.eq.s32.totalorder %s21, 0
      %p168 = por %p166, %p167
      %p169 = scmp.ne.s32.totalorder %s157, %s158
      %p170 = scmp.eq.s32.totalorder %s22, 2
      %p171 = por %p169, %p170
      %p173 = scmp.ne.s32.totalorder %s158, %s172
      %p174 = scmp.eq.s32.totalorder %s22, 0
      %p175 = por %p173, %p174
      %s176 = ssub.s32 %s16, %s23
      %p177 = scmp.eq.s32.totalorder %s176, 0
      %s179 = sadd.s32 %s178, 1
      %s180 = scalar_select %p177, %s178, %s179
      %p183 = pneg %p177
      %p184 = scmp.eq.s32.totalorder %s16, 2
      %p185 = por %p183, %p184
      %p186 = scmp.ne.s32.totalorder %s178, %s181
      %p187 = scmp.eq.s32.totalorder %s16, 0
      %p188 = por %p186, %p187
      %p189 = scmp.ne.s32.totalorder %s178, %s181
      %p190 = scmp.eq.s32.totalorder %s21, 2
      %p191 = por %p189, %p190
      %p192 = scmp.ne.s32.totalorder %s181, %s182
      %p193 = scmp.eq.s32.totalorder %s21, 0
      %p194 = por %p192, %p193
      %p195 = scmp.ne.s32.totalorder %s181, %s182
      %p196 = scmp.eq.s32.totalorder %s22, 2
      %p197 = por %p195, %p196
      %p199 = scmp.ne.s32.totalorder %s182, %s198
      %p200 = scmp.eq.s32.totalorder %s22, 0
      %p201 = por %p199, %p200
      %p202 = scmp.le.s32.totalorder 1, %s16
      %p203 = scmp.lt.s32.totalorder %s16, 4
      %p204 = pnand %p202, %p203
      %p205 = pneg %p204
      // Predicated region
      $region9: #{tpu_custom_call.1} parent=5 // pred_check
        _
      $region10: #{tpu_custom_call.1} parent=5 // pred_check_branch
        %207 = sbr.rel (%p204) target = $region12
      $region11: #{tpu_custom_call.1} parent=5 // pred_region
        %s208 = ssub.s32 %s16, 1
        // Predicated region
        $region13: #{tpu_custom_call.1} parent=11 // pred_check
          %p209 = pneg %p63
        $region14: #{tpu_custom_call.1} parent=11 // pred_check_branch
          %211 = sbr.rel (%p209) target = $region16
        $region15: #{tpu_custom_call.1} parent=11 // pred_region
          _
        $region16: #{tpu_custom_call.1} parent=11 // pred_fallthru
          _
        // Predicated region
        $region17: #{tpu_custom_call.1} parent=11 // pred_check
          %p212 = pneg %p84
        $region18: #{tpu_custom_call.1} parent=11 // pred_check_branch
          %214 = sbr.rel (%p212) target = $region20
        $region19: #{tpu_custom_call.1} parent=11 // pred_region
          _
        $region20: #{tpu_custom_call.1} parent=11 // pred_fallthru
          _
        // Predicated region
        $region21: #{tpu_custom_call.1} parent=11 // pred_check
          %p215 = pneg %p105
        $region22: #{tpu_custom_call.1} parent=11 // pred_check_branch
          %217 = sbr.rel (%p215) target = $region24
        $region23: #{tpu_custom_call.1} parent=11 // pred_region
          _
        $region24: #{tpu_custom_call.1} parent=11 // pred_fallthru
          _
        // Predicated region
        $region25: #{tpu_custom_call.1} parent=11 // pred_check
          %p218 = pneg %p126
        $region26: #{tpu_custom_call.1} parent=11 // pred_check_branch
          %220 = sbr.rel (%p218) target = $region28
        $region27: #{tpu_custom_call.1} parent=11 // pred_region
          _
        $region28: #{tpu_custom_call.1} parent=11 // pred_fallthru
          _
        // Predicated region
        $region29: #{tpu_custom_call.1} parent=11 // pred_check
          %p221 = pneg %p147
        $region30: #{tpu_custom_call.1} parent=11 // pred_check_branch
          %223 = sbr.rel (%p221) target = $region32
        $region31: #{tpu_custom_call.1} parent=11 // pred_region
          _
        $region32: #{tpu_custom_call.1} parent=11 // pred_fallthru
          _
        // Predicated region
        $region33: #{tpu_custom_call.1} parent=11 // pred_check
          %p224 = pneg %p168
        $region34: #{tpu_custom_call.1} parent=11 // pred_check_branch
          %226 = sbr.rel (%p224) target = $region36
        $region35: #{tpu_custom_call.1} parent=11 // pred_region
          _
        $region36: #{tpu_custom_call.1} parent=11 // pred_fallthru
          _
      $region12: #{tpu_custom_call.1} parent=5 // pred_fallthru
        _
      %p227 = scmp.lt.s32.totalorder %s16, 3
      // Predicated region
      $region37: #{tpu_custom_call.1} parent=5 // pred_check
        %p228 = pneg %p227
      $region38: #{tpu_custom_call.1} parent=5 // pred_check_branch
        %230 = sbr.rel (%p228) target = $region40
      $region39: #{tpu_custom_call.1} parent=5 // pred_region
        // Predicated region
        $region41: #{tpu_custom_call.1} parent=39 // pred_check
          %p231 = pneg %p36
        $region42: #{tpu_custom_call.1} parent=39 // pred_check_branch
          %233 = sbr.rel (%p231) target = $region44
        $region43: #{tpu_custom_call.1} parent=39 // pred_region
          %p234 = scmp.lt.s32.totalorder %s16, 2
          %s235 = scalar_select %p234, %s16, 2
          %s236 = smul.addr %s235, 4
          %s237 = scalar_lea.vmem %s0, %s236
        $region44: #{tpu_custom_call.1} parent=39 // pred_fallthru
          _
      $region40: #{tpu_custom_call.1} parent=5 // pred_fallthru
        _
      %p238 = scmp.le.s32.totalorder 1, %s16
      %p239 = scmp.lt.s32.totalorder %s16, 4
      %p240 = pnand %p238, %p239
      %p241 = pneg %p240
      // Predicated region
      $region45: #{tpu_custom_call.1} parent=5 // pred_check
        _
      $region46: #{tpu_custom_call.1} parent=5 // pred_check_branch
        %243 = sbr.rel (%p240) target = $region48
      $region47: #{tpu_custom_call.1} parent=5 // pred_region
        %s244 = ssub.s32 %s16, 1
        %p245 = scmp.lt.s32.totalorder %s21, 2
        %s246 = scalar_select %p245, %s21, 2
        %s247 = smul.addr %s246, 4
        %s248 = scalar_lea.vmem %s0, %s247
        %p249 = pneg %p42
        %p250 = pneg %p39
        %p251 = pneg %p63
        %p252 = pneg %p60
        %p253 = pneg %p84
        %p254 = pneg %p81
        %p255 = pneg %p105
        %p256 = pneg %p102
        %p257 = pneg %p126
        %p258 = pneg %p123
        %p259 = pneg %p147
        %p260 = pneg %p144
        %p261 = pneg %p168
        %p262 = pneg %p165
        %p263 = pneg %p194
        %p264 = pneg %p191
        %s265 = sand.u32 %s181, 1
        %s266 = scalar_lea.sflag [#allocation3], %s265
        %s267 = sand.u32 %s181, 1
        %s268 = smul.addr %s267, 4
        %s269 = scalar_lea.vmem [#allocation2], %s268
        %p270 = scmp.lt.s32.totalorder %s21, 2
        %s271 = scalar_select %p270, %s21, 2
        %s272 = smul.addr %s271, 4
        %s273 = scalar_lea.vmem %s0, %s272
        %v274 = vld [vmem:[%s273] sm:$0x7]
        %v275 = vld [vmem:[%s1] sm:$0xff]
        %v276 = vld [vmem:[%s1 + $0x8] sm:$0x3]
        %v277 = vld [vmem:[%s2] sm:$0xff]
        %v278 = vld [vmem:[%s2 + $0x8] sm:$0x3]
        %280 = vset.pattern.permute.xlu0 0
        %281 = vperm.xlu0 %280, %v277
        %v282 = vpop.permute.xlu0 %281
        %285 = vset.pattern.permute.xlu0 0
        %286 = vperm.xlu0 %285, %v278
        %v287 = vpop.permute.xlu0 %286
        %vm289 = vcmask 23552
        %v291 = vsel %vm289, %v275, 0
        %v294 = vsel %vm289, %v276, 0
        %vm296 = vcmask 1042432
        %v298 = vsel %vm296, %v274, 0
        %300 = vmatprep.subr.mxu0 0.0
        %301 = vmatpush1.msra.mxu0 %v298
        %302 = vmatprep.subr.mxu0 0.0
        %303 = vmatpush1.msra.mxu0 0.0
        %304 = vmatprep.subr.mxu0 0.0
        %305 = vmatpush1.msra.mxu0 0.0
        %306 = vmatprep.subr.mxu0 0.0
        %307 = vmatpush1.msra.mxu0 0.0
        %308 = vmatprep.subr.mxu0 0.0
        %309 = vmatpush1.msra.mxu0 0.0
        %310 = vmatprep.subr.mxu0 0.0
        %311 = vmatpush1.msra.mxu0 0.0
        %312 = vmatprep.subr.mxu0 0.0
        %313 = vmatpush1.msra.mxu0 0.0
        %314 = vmatprep.subr.mxu0 0.0
        %315 = vmatpush1.msra.mxu0 0.0
        %316 = vmatprep.subr.mxu0 0.0
        %317 = vmatpush1.msra.mxu0 0.0
        %318 = vmatprep.subr.mxu0 0.0
        %319 = vmatpush1.msra.mxu0 0.0
        %320 = vmatprep.subr.mxu0 0.0
        %321 = vmatpush1.msra.mxu0 0.0
        %322 = vmatprep.subr.mxu0 0.0
        %323 = vmatpush1.msra.mxu0 0.0
        %324 = vmatprep.subr.mxu0 0.0
        %325 = vmatpush1.msra.mxu0 0.0
        %326 = vmatprep.subr.mxu0 0.0
        %327 = vmatpush1.msra.mxu0 0.0
        %328 = vmatprep.subr.mxu0 0.0
        %329 = vmatpush1.msra.mxu0 0.0
        %330 = vmatprep.subr.mxu0 0.0
        %331 = vmatpush1.msra.mxu0 0.0
        %332 = vmatprep.subr.mxu0 0.0
        %333 = vmatpush1.msra.mxu0 0.0
        %334 = vmatprep.subr.mxu0 0.0
        %335 = vmatpush1.msra.mxu0 0.0
        %336 = vmatprep.subr.mxu0 0.0
        %337 = vmatpush1.msra.mxu0 0.0
        %338 = vmatprep.subr.mxu0 0.0
        %339 = vmatpush1.msra.mxu0 0.0
        %340 = vmatprep.subr.mxu0 0.0
        %341 = vmatpush1.msra.mxu0 0.0
        %342 = vmatprep.subr.mxu0 0.0
        %343 = vmatpush1.msra.mxu0 0.0
        %344 = vmatprep.subr.mxu0 0.0
        %345 = vmatpush1.msra.mxu0 0.0
        %346 = vmatprep.subr.mxu0 0.0
        %347 = vmatpush1.msra.mxu0 0.0
        %348 = vmatprep.subr.mxu0 0.0
        %349 = vmatpush1.msra.mxu0 0.0
        %350 = vmatprep.subr.mxu0 0.0
        %351 = vmatpush1.msra.mxu0 0.0
        %352 = vmatprep.subr.mxu0 0.0
        %353 = vmatpush1.msra.mxu0 0.0
        %354 = vmatprep.subr.mxu0 0.0
        %355 = vmatpush1.msra.mxu0 0.0
        %356 = vmatprep.subr.mxu0 0.0
        %357 = vmatpush1.msra.mxu0 0.0
        %358 = vmatprep.subr.mxu0 0.0
        %359 = vmatpush1.msra.mxu0 0.0
        %360 = vmatprep.subr.mxu0 0.0
        %361 = vmatpush1.msra.mxu0 0.0
        %362 = vmatprep.subr.mxu0 0.0
        %363 = vmatpush1.msra.mxu0 0.0
        %364 = vmatprep.mubr.f32.mxu0 0.0
        %365 = vmatmul.mubr.f32.gmra.mrb[0].mxu0 %v291
        %v366 = vpop.f32.mrb[0].mxu0
        %v367 = vadd.f32 %v282, %v366
        %v368 = vpop.f32.mrb[0].mxu0
        %369 = vmatprep.mubr.f32.mxu0 0.0
        %370 = vmatmul.mubr.f32.gmra.mrb[0].mxu0 %v294
        %v371 = vpop.f32.mrb[0].mxu0
        %v372 = vadd.f32 %v287, %v371
        %v373 = vpop.f32.mrb[0].mxu0
        %374 = vdwg.mxu0
        %v375 = vtanh.pop %v367
        %v376 = vtanh.pop %v372
        %v377 = vld [vmem:[%s3] sm:$0xff]
        %v378 = vld [vmem:[%s3 + $0x8] sm:$0x3]
        %v379 = vld [vmem:[%s4] sm:$0xff]
        %v380 = vld [vmem:[%s4 + $0x8] sm:$0x3]
        %382 = vset.pattern.permute.xlu0 0
        %383 = vperm.xlu0 %382, %v379
        %v384 = vpop.permute.xlu0 %383
        %387 = vset.pattern.permute.xlu0 0
        %388 = vperm.xlu0 %387, %v380
        %v389 = vpop.permute.xlu0 %388
        %vm391 = vcmask 80896
        %v393 = vsel %vm391, %v377, 0
        %v396 = vsel %vm391, %v378, 0
        %vm398 = vcmask 1041408
        %v400 = vsel %vm398, %v376, 0
        %402 = vmatprep.subr.mxu0 0.0
        %403 = vmatpush1.msra.mxu0 %v375
        %404 = vmatprep.subr.mxu0 0.0
        %405 = vmatpush1.msra.mxu0 %v400
        %406 = vmatprep.subr.mxu0 0.0
        %407 = vmatpush1.msra.mxu0 0.0
        %408 = vmatprep.subr.mxu0 0.0
        %409 = vmatpush1.msra.mxu0 0.0
        %410 = vmatprep.subr.mxu0 0.0
        %411 = vmatpush1.msra.mxu0 0.0
        %412 = vmatprep.subr.mxu0 0.0
        %413 = vmatpush1.msra.mxu0 0.0
        %414 = vmatprep.subr.mxu0 0.0
        %415 = vmatpush1.msra.mxu0 0.0
        %416 = vmatprep.subr.mxu0 0.0
        %417 = vmatpush1.msra.mxu0 0.0
        %418 = vmatprep.subr.mxu0 0.0
        %419 = vmatpush1.msra.mxu0 0.0
        %420 = vmatprep.subr.mxu0 0.0
        %421 = vmatpush1.msra.mxu0 0.0
        %422 = vmatprep.subr.mxu0 0.0
        %423 = vmatpush1.msra.mxu0 0.0
        %424 = vmatprep.subr.mxu0 0.0
        %425 = vmatpush1.msra.mxu0 0.0
        %426 = vmatprep.subr.mxu0 0.0
        %427 = vmatpush1.msra.mxu0 0.0
        %428 = vmatprep.subr.mxu0 0.0
        %429 = vmatpush1.msra.mxu0 0.0
        %430 = vmatprep.subr.mxu0 0.0
        %431 = vmatpush1.msra.mxu0 0.0
        %432 = vmatprep.subr.mxu0 0.0
        %433 = vmatpush1.msra.mxu0 0.0
        %434 = vmatprep.subr.mxu0 0.0
        %435 = vmatpush1.msra.mxu0 0.0
        %436 = vmatprep.subr.mxu0 0.0
        %437 = vmatpush1.msra.mxu0 0.0
        %438 = vmatprep.subr.mxu0 0.0
        %439 = vmatpush1.msra.mxu0 0.0
        %440 = vmatprep.subr.mxu0 0.0
        %441 = vmatpush1.msra.mxu0 0.0
        %442 = vmatprep.subr.mxu0 0.0
        %443 = vmatpush1.msra.mxu0 0.0
        %444 = vmatprep.subr.mxu0 0.0
        %445 = vmatpush1.msra.mxu0 0.0
        %446 = vmatprep.subr.mxu0 0.0
        %447 = vmatpush1.msra.mxu0 0.0
        %448 = vmatprep.subr.mxu0 0.0
        %449 = vmatpush1.msra.mxu0 0.0
        %450 = vmatprep.subr.mxu0 0.0
        %451 = vmatpush1.msra.mxu0 0.0
        %452 = vmatprep.subr.mxu0 0.0
        %453 = vmatpush1.msra.mxu0 0.0
        %454 = vmatprep.subr.mxu0 0.0
        %455 = vmatpush1.msra.mxu0 0.0
        %456 = vmatprep.subr.mxu0 0.0
        %457 = vmatpush1.msra.mxu0 0.0
        %458 = vmatprep.subr.mxu0 0.0
        %459 = vmatpush1.msra.mxu0 0.0
        %460 = vmatprep.subr.mxu0 0.0
        %461 = vmatpush1.msra.mxu0 0.0
        %462 = vmatprep.subr.mxu0 0.0
        %463 = vmatpush1.msra.mxu0 0.0
        %464 = vmatprep.subr.mxu0 0.0
        %465 = vmatpush1.msra.mxu0 0.0
        %466 = vmatprep.mubr.f32.mxu0 0.0
        %467 = vmatmul.mubr.f32.gmra.mrb[0].mxu0 %v393
        %v468 = vpop.f32.mrb[0].mxu0
        %v469 = vadd.f32 %v384, %v468
        %v470 = vpop.f32.mrb[0].mxu0
        %471 = vmatprep.mubr.f32.mxu0 0.0
        %472 = vmatmul.mubr.f32.gmra.mrb[0].mxu0 %v396
        %v473 = vpop.f32.mrb[0].mxu0
        %v474 = vadd.f32 %v389, %v473
        %v475 = vpop.f32.mrb[0].mxu0
        %476 = vdwg.mxu0
        %v477 = vtanh.pop %v469
        %v478 = vtanh.pop %v474
        %v479 = vld [vmem:[%s5] sm:$0x7]
        %v480 = vld [vmem:[%s6] sm:$0x7]
        %482 = vset.pattern.permute.xlu0 0
        %483 = vperm.xlu0 %482, %v480
        %v484 = vpop.permute.xlu0 %483
        %v487 = vsel %vm391, %v479, 0
        %v490 = vsel %vm398, %v478, 0
        %492 = vmatprep.subr.mxu0 0.0
        %493 = vmatpush1.msra.mxu0 %v477
        %494 = vmatprep.subr.mxu0 0.0
        %495 = vmatpush1.msra.mxu0 %v490
        %496 = vmatprep.subr.mxu0 0.0
        %497 = vmatpush1.msra.mxu0 0.0
        %498 = vmatprep.subr.mxu0 0.0
        %499 = vmatpush1.msra.mxu0 0.0
        %500 = vmatprep.subr.mxu0 0.0
        %501 = vmatpush1.msra.mxu0 0.0
        %502 = vmatprep.subr.mxu0 0.0
        %503 = vmatpush1.msra.mxu0 0.0
        %504 = vmatprep.subr.mxu0 0.0
        %505 = vmatpush1.msra.mxu0 0.0
        %506 = vmatprep.subr.mxu0 0.0
        %507 = vmatpush1.msra.mxu0 0.0
        %508 = vmatprep.subr.mxu0 0.0
        %509 = vmatpush1.msra.mxu0 0.0
        %510 = vmatprep.subr.mxu0 0.0
        %511 = vmatpush1.msra.mxu0 0.0
        %512 = vmatprep.subr.mxu0 0.0
        %513 = vmatpush1.msra.mxu0 0.0
        %514 = vmatprep.subr.mxu0 0.0
        %515 = vmatpush1.msra.mxu0 0.0
        %516 = vmatprep.subr.mxu0 0.0
        %517 = vmatpush1.msra.mxu0 0.0
        %518 = vmatprep.subr.mxu0 0.0
        %519 = vmatpush1.msra.mxu0 0.0
        %520 = vmatprep.subr.mxu0 0.0
        %521 = vmatpush1.msra.mxu0 0.0
        %522 = vmatprep.subr.mxu0 0.0
        %523 = vmatpush1.msra.mxu0 0.0
        %524 = vmatprep.subr.mxu0 0.0
        %525 = vmatpush1.msra.mxu0 0.0
        %526 = vmatprep.subr.mxu0 0.0
        %527 = vmatpush1.msra.mxu0 0.0
        %528 = vmatprep.subr.mxu0 0.0
        %529 = vmatpush1.msra.mxu0 0.0
        %530 = vmatprep.subr.mxu0 0.0
        %531 = vmatpush1.msra.mxu0 0.0
        %532 = vmatprep.subr.mxu0 0.0
        %533 = vmatpush1.msra.mxu0 0.0
        %534 = vmatprep.subr.mxu0 0.0
        %535 = vmatpush1.msra.mxu0 0.0
        %536 = vmatprep.subr.mxu0 0.0
        %537 = vmatpush1.msra.mxu0 0.0
        %538 = vmatprep.subr.mxu0 0.0
        %539 = vmatpush1.msra.mxu0 0.0
        %540 = vmatprep.subr.mxu0 0.0
        %541 = vmatpush1.msra.mxu0 0.0
        %542 = vmatprep.subr.mxu0 0.0
        %543 = vmatpush1.msra.mxu0 0.0
        %544 = vmatprep.subr.mxu0 0.0
        %545 = vmatpush1.msra.mxu0 0.0
        %546 = vmatprep.subr.mxu0 0.0
        %547 = vmatpush1.msra.mxu0 0.0
        %548 = vmatprep.subr.mxu0 0.0
        %549 = vmatpush1.msra.mxu0 0.0
        %550 = vmatprep.subr.mxu0 0.0
        %551 = vmatpush1.msra.mxu0 0.0
        %552 = vmatprep.subr.mxu0 0.0
        %553 = vmatpush1.msra.mxu0 0.0
        %554 = vmatprep.subr.mxu0 0.0
        %555 = vmatpush1.msra.mxu0 0.0
        %556 = vmatprep.mubr.f32.mxu0 0.0
        %557 = vmatmul.mubr.f32.gmra.mrb[0].mxu0 %v487
        %v558 = vpop.f32.mrb[0].mxu0
        %v559 = vadd.f32 %v484, %v558
        %v560 = vpop.f32.mrb[0].mxu0
        %561 = vdwg.mxu0
        %v562 = vand.u32 2147483647, %v559
        %563 = vst [vmem:[%s269] sm:$0x7] %v562
        %s564 = sand.u32 %s181, 1
        %s565 = scalar_lea.sflag [#allocation3], %s564
        %s566 = sand.u32 %s181, 1
        %s567 = smul.addr %s566, 4
        %s568 = scalar_lea.vmem [#allocation2], %s567
        // Predicated region
        $region49: #{tpu_custom_call.1} parent=47 // pred_check
          %p569 = pneg %p191
        $region50: #{tpu_custom_call.1} parent=47 // pred_check_branch
          %571 = sbr.rel (%p569) target = $region52
        $region51: #{tpu_custom_call.1} parent=47 // pred_region
          %s573 = ssub.s32 64, 64
          %574 = vsyncadd %s565, %s573
          %s575 = smul.addr %s21, 64
          %s576 = scalar_lea.hbm %s7, %s575
          %s578 = sshll.u32 %s568, 4
          %s579 = int_to_ptr.vmem [resolvable:$true] %s578
          %581 = dma.vmem_to_hbm [thread:$0]  %s579, 64, %s576, %s565
        $region52: #{tpu_custom_call.1} parent=47 // pred_fallthru
          _
      $region48: #{tpu_custom_call.1} parent=5 // pred_fallthru
        _
      %p582 = scmp.le.s32.totalorder 2, %s16
      // Predicated region
      $region53: #{tpu_custom_call.1} parent=5 // pred_check
        %p583 = pneg %p582
      $region54: #{tpu_custom_call.1} parent=5 // pred_check_branch
        %585 = sbr.rel (%p583) target = $region56
      $region55: #{tpu_custom_call.1} parent=5 // pred_region
        %s586 = ssub.s32 %s16, 2
        // Predicated region
        $region57: #{tpu_custom_call.1} parent=55 // pred_check
          %p587 = pneg %p197
        $region58: #{tpu_custom_call.1} parent=55 // pred_check_branch
          %589 = sbr.rel (%p587) target = $region60
        $region59: #{tpu_custom_call.1} parent=55 // pred_region
          %s590 = sand.u32 %s182, 1
          %s591 = scalar_lea.sflag [#allocation3], %s590
          %s592 = sand.u32 %s182, 1
          %s593 = smul.addr %s592, 4
          %s594 = scalar_lea.vmem [#allocation2], %s593
          %595 = dma.done %s591, 64
        $region60: #{tpu_custom_call.1} parent=55 // pred_fallthru
          _
      $region56: #{tpu_custom_call.1} parent=5 // pred_fallthru
        _
    $region6: #{tpu_custom_call.1} parent=1 // loop_footer
      %s20 = sadd.s32 1, %s16
    $region7: #{tpu_custom_call.1} parent=1 // loop_footer_branch
      %15 = sbr.rel target = $region3
    $region8: #{tpu_custom_call.1} parent=1 // loop_exit
      _
    %596 = vsyncpa [#allocation3], 1
    %s597 = scalar_lea.sflag [#allocation3], 1
    %598 = vsyncpa %s597, 1

</llo_original>
